<compile_context>
chip_gen: v7x
topology: tpu7x:2x2x1
jax: 0.10.0
libtpu: 0.0.40
codegen_flags: <defaults>
</compile_context>

<pallas_src>
import jax
import jax.numpy as jnp
from jax import lax
from jax.experimental import pallas as pl
from jax.experimental.pallas import tpu as pltpu


def conv1x1_add_kernel(params_ref, x_ref, o_ref):
    # params_ref: SMEM (6,) f32 = [w0, w1, ce0, co0, ce1, co1]
    #   where ce_c = bias_c + addend[0] (even W index),
    #         co_c = bias_c + addend[1] (odd  W index).
    # x_ref: VMEM (1, TR, C)        dense per-image pixel slab
    # o_ref: VMEM (1, Cout, TR, C)  channel planes in torch output order
    x = x_ref[0]                                            # (TR, C)

    # addend parity along the lane axis: C is even, so lane parity == the
    # within-image flat pixel parity == the W coordinate (W == 2).
    lane = lax.broadcasted_iota(jnp.int32, x.shape, dimension=1)
    odd = (lane & 1) == 1

    # Two broadcast FMAs + selects on the VPU; direct per-channel plane writes
    # (no sublane concatenate / relayout).
    o_ref[0, 0] = x * params_ref[0] + jnp.where(odd, params_ref[3], params_ref[2])
    o_ref[0, 1] = x * params_ref[1] + jnp.where(odd, params_ref[5], params_ref[4])


def model_forward(x_nchw, weight, bias, addend):
    """x_nchw: (N, 1, H, W) f32; weight: (2, 1, 1, 1); bias: (2,); addend: (W,)."""
    N, Cin, H, W = x_nchw.shape
    Cout = weight.shape[0]
    assert Cin == 1 and Cout == 2, "module is Conv2d(1, 2, 1)"
    assert W == 2 and addend.shape == (W,), "torch broadcast requires W == len(addend) == 2"

    HW = H * W

    # ---- per-image 2-D (R, C) layout: pick the widest lane dim (<=1024,
    # multiple of 128) that divides H*W; otherwise use one row per image.
    # Either way the reshape below is a pure row-major reinterpretation
    # (no pad, no copy), and C is even so the parity trick stays valid.
    C = next((c for c in (1024, 512, 256, 128) if HW % c == 0), HW)
    R = HW // C
    assert C % 2 == 0 and R * C == HW

    # ---- rows per grid step: ~2 MiB (512K f32) of input per block.
    # Double-buffered footprint ~= 2 * (in + 2*in) = 6 * TR * C * 4 B ~= 12 MiB,
    # safely under the explicit 32 MiB VMEM limit below (v7x has 64 MiB
    # physical; v5e's default scoped limit of 16 MiB is raised by the flag).
    TARGET_ELEMS = 512 * 1024
    if R <= 8:
        TR = R                              # full-dim block (small images)
    else:
        TR = max(8, min(R, TARGET_ELEMS // C) // 8 * 8)

    # Cin == 1 -> (N, 1, H, W) flattens to (N, R, C) as a free reshape.
    x3 = x_nchw.reshape(N, R, C)

    # 6 scalars for SMEM: [w0, w1, b0+a0, b0+a1, b1+a0, b1+a1]
    w = weight.reshape(Cout).astype(jnp.float32)
    b = bias.reshape(Cout).astype(jnp.float32)
    a = addend.reshape(W).astype(jnp.float32)
    params = jnp.stack(
        [w[0], w[1], b[0] + a[0], b[0] + a[1], b[1] + a[0], b[1] + a[1]]
    ).astype(jnp.float32)

    out4 = pl.pallas_call(
        conv1x1_add_kernel,
        out_shape=jax.ShapeDtypeStruct((N, Cout, R, C), jnp.float32),
        grid=(N, pl.cdiv(R, TR)),
        in_specs=[
            pl.BlockSpec(memory_space=pltpu.MemorySpace.SMEM),       # params (6,)
            pl.BlockSpec((1, TR, C), lambda n, r: (n, r, 0)),        # input slab
        ],
        out_specs=pl.BlockSpec((1, Cout, TR, C), lambda n, r: (n, 0, r, 0)),
        compiler_params=pltpu.CompilerParams(
            dimension_semantics=("parallel", "parallel"),
            vmem_limit_bytes=32 * 1024 * 1024,
        ),
    )(params, x3)

    # (N, Cout, R, C) -> (N, Cout, H, W) is a free reshape (same element order):
    # no transpose, no slice, no extra HBM pass.
    return out4.reshape(N, Cout, H, W)


if __name__ == "__main__":
    key = jax.random.PRNGKey(0)
    kx, kw, kb = jax.random.split(key, 3)

    # Small shapes consistent with the module's forward: W must be 2 for the
    # torch broadcast of tensor([0., 1.]) over the last dim to be valid.
    N, Cin, H, W = 2, 1, 8, 2
    Cout = 2

    x = jax.random.normal(kx, (N, Cin, H, W), dtype=jnp.float32)
    weight = jax.random.normal(kw, (Cout, Cin, 1, 1), dtype=jnp.float32) * 0.5
    bias = jax.random.normal(kb, (Cout,), dtype=jnp.float32) * 0.1
    addend = jnp.array([0.0, 1.0], dtype=jnp.float32)

    out = jax.block_until_ready(model_forward(x, weight, bias, addend))

    # plain-JAX reference for a correctness check
    ref = (jnp.einsum('nchw,oc->nohw', x, weight.reshape(Cout, Cin))
           + bias.reshape(1, Cout, 1, 1)
           + addend.reshape(1, 1, 1, W))
    assert out.shape == (N, Cout, H, W)
    assert jnp.allclose(out, ref, atol=1e-5), "kernel output mismatch vs reference"
    print("KERNEL_OK")
</pallas_src>

<mosaic_0001>
module attributes {stable_mosaic.version = 11 : i64} {
  func.func @conv1x1_add_kernel(%arg0: i32, %arg1: i32, %arg2: memref<6xf32, #tpu.memory_space<smem>>, %arg3: memref<1x1x16xf32, #tpu.memory_space<vmem>>, %arg4: memref<1x2x1x16xf32, #tpu.memory_space<vmem>>) attributes {dimension_semantics = [#tpu.dimension_semantics<parallel>, #tpu.dimension_semantics<parallel>], iteration_bounds = array<i64: 2, 1>, scalar_prefetch = 0 : i64, scratch_operands = 0 : i64, tpu.core_type = #tpu.core_type<tc>, window_params = [{transform_indices = @transform_0, window_bounds = array<i64: 6>}, {transform_indices = @transform_1, window_bounds = array<i64: 1, 1, 16>}, {transform_indices = @transform_2, window_bounds = array<i64: 1, 2, 1, 16>}]} {
    %c0 = arith.constant 0 : index
    %c0_0 = arith.constant 0 : index
    %c0_1 = arith.constant 0 : index
    %0 = vector.load %arg3[%c0, %c0_0, %c0_1] : memref<1x1x16xf32, #tpu.memory_space<vmem>>, vector<1x1x16xf32>
    %1 = vector.shape_cast %0 : vector<1x1x16xf32> to vector<1x16xf32>
    %2 = tpu.iota {dimensions = array<i32: 1>} : vector<1x16xi32>
    %c1_i32 = arith.constant 1 : i32
    %3 = vector.broadcast %c1_i32 : i32 to vector<1x16xi32>
    %4 = arith.andi %2, %3 : vector<1x16xi32>
    %c1_i32_2 = arith.constant 1 : i32
    %5 = vector.broadcast %c1_i32_2 : i32 to vector<1x16xi32>
    %6 = arith.cmpi eq, %4, %5 : vector<1x16xi32>
    %c0_3 = arith.constant 0 : index
    %7 = memref.load %arg2[%c0_3] : memref<6xf32, #tpu.memory_space<smem>>
    %8 = vector.broadcast %7 : f32 to vector<1x16xf32>
    %9 = arith.mulf %1, %8 : vector<1x16xf32>
    %c3 = arith.constant 3 : index
    %10 = memref.load %arg2[%c3] : memref<6xf32, #tpu.memory_space<smem>>
    %c2 = arith.constant 2 : index
    %11 = memref.load %arg2[%c2] : memref<6xf32, #tpu.memory_space<smem>>
    %12 = vector.broadcast %10 : f32 to vector<1x16xf32>
    %13 = vector.broadcast %11 : f32 to vector<1x16xf32>
    %14 = arith.select %6, %12, %13 : vector<1x16xi1>, vector<1x16xf32>
    %15 = arith.addf %9, %14 : vector<1x16xf32>
    %c0_4 = arith.constant 0 : index
    %c0_5 = arith.constant 0 : index
    %c0_6 = arith.constant 0 : index
    %c0_7 = arith.constant 0 : index
    %16 = vector.load %arg4[%c0_4, %c0_5, %c0_6, %c0_7] : memref<1x2x1x16xf32, #tpu.memory_space<vmem>>, vector<1x1x1x16xf32>
    %17 = vector.shape_cast %16 : vector<1x1x1x16xf32> to vector<1x16xf32>
    %18 = vector.shape_cast %15 : vector<1x16xf32> to vector<1x1x1x16xf32>
    tpu.vector_store %arg4[%c0_4, %c0_5, %c0_6, %c0_7], %18 {strides = array<i32>} : memref<1x2x1x16xf32, #tpu.memory_space<vmem>>, vector<1x1x1x16xf32>,
    %c1 = arith.constant 1 : index
    %19 = memref.load %arg2[%c1] : memref<6xf32, #tpu.memory_space<smem>>
    %20 = vector.broadcast %19 : f32 to vector<1x16xf32>
    %21 = arith.mulf %1, %20 : vector<1x16xf32>
    %c5 = arith.constant 5 : index
    %22 = memref.load %arg2[%c5] : memref<6xf32, #tpu.memory_space<smem>>
    %c4 = arith.constant 4 : index
    %23 = memref.load %arg2[%c4] : memref<6xf32, #tpu.memory_space<smem>>
    %24 = vector.broadcast %22 : f32 to vector<1x16xf32>
    %25 = vector.broadcast %23 : f32 to vector<1x16xf32>
    %26 = arith.select %6, %24, %25 : vector<1x16xi1>, vector<1x16xf32>
    %27 = arith.addf %21, %26 : vector<1x16xf32>
    %c0_8 = arith.constant 0 : index
    %c1_9 = arith.constant 1 : index
    %c0_10 = arith.constant 0 : index
    %c0_11 = arith.constant 0 : index
    %28 = vector.load %arg4[%c0_8, %c1_9, %c0_10, %c0_11] : memref<1x2x1x16xf32, #tpu.memory_space<vmem>>, vector<1x1x1x16xf32>
    %29 = vector.shape_cast %28 : vector<1x1x1x16xf32> to vector<1x16xf32>
    %30 = vector.shape_cast %27 : vector<1x16xf32> to vector<1x1x1x16xf32>
    tpu.vector_store %arg4[%c0_8, %c1_9, %c0_10, %c0_11], %30 {strides = array<i32>} : memref<1x2x1x16xf32, #tpu.memory_space<vmem>>, vector<1x1x1x16xf32>,
    return
  }
  func.func @transform_0(%arg0: i32, %arg1: i32) -> i32 {
    %c0_i32 = arith.constant 0 : i32
    %c0_i32_0 = arith.constant 0 : i32
    return %c0_i32 : i32
  }
  func.func @transform_1(%arg0: i32, %arg1: i32) -> (i32, i32, i32) {
    %c0_i32 = arith.constant 0 : i32
    %c0_i32_0 = arith.constant 0 : i32
    return %arg0, %arg1, %c0_i32 : i32, i32, i32
  }
  func.func @transform_2(%arg0: i32, %arg1: i32) -> (i32, i32, i32, i32) {
    %c0_i32 = arith.constant 0 : i32
    %c0_i32_0 = arith.constant 0 : i32
    %c0_i32_1 = arith.constant 0 : i32
    return %arg0, %c0_i32, %arg1, %c0_i32_0 : i32, i32, i32, i32
  }
}

</mosaic_0001>

<llo_original>
// kernel: tpu_custom_call.1
$region0: #{tpu_custom_call.1}
  #allocation0 [shape = 'u32[]', space=smem, size = 0x4, offset = 0x4, fixed_abs, tag = 'smem constant byte address 0x4 - core index']
  #allocation1 [shape = 'u32[144,128]{1,0:T(1,128)}', space=vmem, size = 0x12000, scoped, tag = 'internal scratch']
  %s0 = inlined_call_operand.hbm [shape: f32[6], index: 0, kind: input, shape index: {}]
  %s1 = inlined_call_operand.vmem [shape: f32[2,1,16], index: 1, kind: input, shape index: {}]
  %s2 = inlined_call_operand.hbm [shape: f32[2,2,1,16], index: 2, kind: output, shape index: {}]
  %s3 = sld [smem:[#allocation0]]
  $region45: #{tpu_custom_call.1} parent=0
    _
  %s5 = ssub.s32 1, %s3
  %s6 = scalar_select 0, %s5, %s3
  $region1: #{tpu_custom_call.1} parent=0
    #allocation2 [shape = 'u8[512]{0}', space=smem, size = 0x200, scoped, tag = 'input window, operand 0, single buffered']
    #allocation3 [shape = 's32[2]{0}', space=sflag, size = 0x8, scoped, tag = 'scoped memory for tpu_custom_call.1']
    #allocation4 [shape = 's32[2]{0}', space=sflag, size = 0x8, scoped, tag = 'scoped memory for tpu_custom_call.1']
    #allocation5 [shape = 'u8[2048]{0}', space=vmem, size = 0x800, scoped, tag = 'output window, operand 0']
    %7 = vsyncpa [#allocation4], 0
    %8 = vsyncpa [#allocation3], 0
    %s9 = scalar_lea.sflag [#allocation3], 1
    %10 = vsyncpa %s9, 0
    loop: start=0, step=1, limit=4
    $region2: #{tpu_custom_call.1} parent=1 // loop_pre_header
      _
    $region3: #{tpu_custom_call.1} parent=1 // loop_header
      %s12 = sphi 0, %s16
      %p13 = scmp.ge.s32.totalorder %s12, 4
      %s19 = sphi 0, %s31
      %s20 = sphi 0, %s27
      %s21 = sphi 0, %s19
      %s22 = sphi 0, %s20
      %s23 = sphi 0, %s21
      %s24 = sphi 0, %s22
      %s32 = sphi 0, %s32
      %s34 = sphi 0, %s32
      %s35 = sphi 0, %s34
      %s49 = sphi 0, %s35
      %s57 = sphi 0, %s59
      %s60 = sphi 0, %s57
      %s61 = sphi 0, %s60
      %s77 = sphi 0, %s61
      %s85 = sphi 0, %s87
      %s88 = sphi 0, %s85
      %s89 = sphi 0, %s88
      %s105 = sphi 0, %s89
    $region4: #{tpu_custom_call.1} parent=1 // loop_header_branch
      %15 = sbr.rel (%p13) target = $region8
    $region5: #{tpu_custom_call.1} parent=1 // loop_body
      %s17 = ssub.s32 %s12, 1
      %s18 = ssub.s32 %s12, 2
      %s25 = sadd.s32 1, %s20
      %p26 = scmp.ge.s32.totalorder %s25, 1
      %s27 = scalar_select %p26, 0, %s25
      %s28 = sadd.s32 1, %s19
      %s29 = scalar_select %p26, %s28, %s19
      %p30 = scmp.ge.s32.totalorder %s29, 2
      %s31 = scalar_select %p30, 0, %s29
      %s33 = sadd.s32 %s32, 1
      %p36 = scmp.eq.s32.totalorder %s12, 1
      %p37 = scmp.ne.s32.totalorder %s32, %s34
      %p38 = scmp.eq.s32.totalorder %s12, 0
      %p39 = por %p37, %p38
      %p40 = scmp.ne.s32.totalorder %s32, %s34
      %p41 = scmp.eq.s32.totalorder %s17, 1
      %p42 = por %p40, %p41
      %p43 = scmp.ne.s32.totalorder %s34, %s35
      %p44 = scmp.eq.s32.totalorder %s17, 0
      %p45 = por %p43, %p44
      %p46 = scmp.ne.s32.totalorder %s34, %s35
      %p47 = scmp.eq.s32.totalorder %s18, 1
      %p48 = por %p46, %p47
      %p50 = scmp.ne.s32.totalorder %s35, %s49
      %p51 = scmp.eq.s32.totalorder %s18, 0
      %p52 = por %p50, %p51
      %s53 = ssub.s32 %s19, %s31
      %s54 = ssub.s32 %s20, %s27
      %s55 = sor.u32 %s53, %s54
      %p56 = scmp.eq.s32.totalorder %s55, 0
      %s58 = sadd.s32 %s57, 1
      %s59 = scalar_select %p56, %s57, %s58
      %p62 = pneg %p56
      %p63 = scmp.eq.s32.totalorder %s12, 1
      %p64 = por %p62, %p63
      %p65 = scmp.ne.s32.totalorder %s57, %s60
      %p66 = scmp.eq.s32.totalorder %s12, 0
      %p67 = por %p65, %p66
      %p68 = scmp.ne.s32.totalorder %s57, %s60
      %p69 = scmp.eq.s32.totalorder %s17, 1
      %p70 = por %p68, %p69
      %p71 = scmp.ne.s32.totalorder %s60, %s61
      %p72 = scmp.eq.s32.totalorder %s17, 0
      %p73 = por %p71, %p72
      %p74 = scmp.ne.s32.totalorder %s60, %s61
      %p75 = scmp.eq.s32.totalorder %s18, 1
      %p76 = por %p74, %p75
      %p78 = scmp.ne.s32.totalorder %s61, %s77
      %p79 = scmp.eq.s32.totalorder %s18, 0
      %p80 = por %p78, %p79
      %s81 = ssub.s32 %s19, %s31
      %s82 = ssub.s32 %s20, %s27
      %s83 = sor.u32 %s81, %s82
      %p84 = scmp.eq.s32.totalorder %s83, 0
      %s86 = sadd.s32 %s85, 1
      %s87 = scalar_select %p84, %s85, %s86
      %p90 = pneg %p84
      %p91 = scmp.eq.s32.totalorder %s12, 1
      %p92 = por %p90, %p91
      %p93 = scmp.ne.s32.totalorder %s85, %s88
      %p94 = scmp.eq.s32.totalorder %s12, 0
      %p95 = por %p93, %p94
      %p96 = scmp.ne.s32.totalorder %s85, %s88
      %p97 = scmp.eq.s32.totalorder %s17, 1
      %p98 = por %p96, %p97
      %p99 = scmp.ne.s32.totalorder %s88, %s89
      %p100 = scmp.eq.s32.totalorder %s17, 0
      %p101 = por %p99, %p100
      %p102 = scmp.ne.s32.totalorder %s88, %s89
      %p103 = scmp.eq.s32.totalorder %s18, 1
      %p104 = por %p102, %p103
      %p106 = scmp.ne.s32.totalorder %s89, %s105
      %p107 = scmp.eq.s32.totalorder %s18, 0
      %p108 = por %p106, %p107
      %p109 = scmp.le.s32.totalorder 1, %s12
      %p110 = scmp.lt.s32.totalorder %s12, 3
      %p111 = pnand %p109, %p110
      %p112 = pneg %p111
      // Predicated region
      $region9: #{tpu_custom_call.1} parent=5 // pred_check
        _
      $region10: #{tpu_custom_call.1} parent=5 // pred_check_branch
        %114 = sbr.rel (%p111) target = $region12
      $region11: #{tpu_custom_call.1} parent=5 // pred_region
        %s115 = ssub.s32 %s12, 1
        // Predicated region
        $region13: #{tpu_custom_call.1} parent=11 // pred_check
          %p116 = pneg %p45
        $region14: #{tpu_custom_call.1} parent=11 // pred_check_branch
          %118 = sbr.rel (%p116) target = $region16
        $region15: #{tpu_custom_call.1} parent=11 // pred_region
          %s120 = ssub.s32 16, 16
          %121 = vsyncadd [#allocation4], %s120
          %124 = dma.hbm_to_smem %s0, 16, [#allocation2], [#allocation4]
        $region16: #{tpu_custom_call.1} parent=11 // pred_fallthru
          _
      $region12: #{tpu_custom_call.1} parent=5 // pred_fallthru
        _
      %p125 = scmp.lt.s32.totalorder %s12, 2
      // Predicated region
      $region17: #{tpu_custom_call.1} parent=5 // pred_check
        %p126 = pneg %p125
      $region18: #{tpu_custom_call.1} parent=5 // pred_check_branch
        %128 = sbr.rel (%p126) target = $region20
      $region19: #{tpu_custom_call.1} parent=5 // pred_region
        // Predicated region
        $region21: #{tpu_custom_call.1} parent=19 // pred_check
          %p129 = pneg %p67
        $region22: #{tpu_custom_call.1} parent=19 // pred_check_branch
          %131 = sbr.rel (%p129) target = $region24
        $region23: #{tpu_custom_call.1} parent=19 // pred_region
          %p132 = scmp.lt.s32.totalorder %s19, 1
          %s133 = scalar_select %p132, %s19, 1
          %p134 = scmp.lt.s32.totalorder %s20, 0
          %s135 = scalar_select %p134, %s20, 0
          %s136 = sadd.s32 %s135, %s133
          %s137 = scalar_lea.vmem %s1, %s136
        $region24: #{tpu_custom_call.1} parent=19 // pred_fallthru
          _
      $region20: #{tpu_custom_call.1} parent=5 // pred_fallthru
        _
      %p138 = scmp.le.s32.totalorder 1, %s12
      %p139 = scmp.lt.s32.totalorder %s12, 3
      %p140 = pnand %p138, %p139
      %p141 = pneg %p140
      // Predicated region
      $region25: #{tpu_custom_call.1} parent=5 // pred_check
        _
      $region26: #{tpu_custom_call.1} parent=5 // pred_check_branch
        %143 = sbr.rel (%p140) target = $region28
      $region27: #{tpu_custom_call.1} parent=5 // pred_region
        %s144 = ssub.s32 %s12, 1
        // Predicated region
        $region29: #{tpu_custom_call.1} parent=27 // pred_check
          %p145 = pneg %p45
        $region30: #{tpu_custom_call.1} parent=27 // pred_check_branch
          %147 = sbr.rel (%p145) target = $region32
        $region31: #{tpu_custom_call.1} parent=27 // pred_region
          %148 = dma.done [#allocation4], 16
        $region32: #{tpu_custom_call.1} parent=27 // pred_fallthru
          _
        %149 = sfence
        %p150 = pneg %p45
        %p151 = pneg %p42
        %p152 = scmp.lt.s32.totalorder %s21, 1
        %s153 = scalar_select %p152, %s21, 1
        %p154 = scmp.lt.s32.totalorder %s22, 0
        %s155 = scalar_select %p154, %s22, 0
        %s156 = sadd.s32 %s155, %s153
        %s157 = scalar_lea.vmem %s1, %s156
        %p158 = pneg %p73
        %p159 = pneg %p70
        %p160 = pneg %p101
        %p161 = pneg %p98
        %s162 = sand.u32 %s88, 1
        %s163 = scalar_lea.sflag [#allocation3], %s162
        %s164 = sand.u32 %s88, 1
        %s165 = smul.addr %s164, 2
        %s166 = scalar_lea.vmem [#allocation5], %s165
        %p167 = scmp.lt.s32.totalorder %s21, 1
        %s168 = scalar_select %p167, %s21, 1
        %p169 = scmp.lt.s32.totalorder %s22, 0
        %s170 = scalar_select %p169, %s22, 0
        %s171 = sadd.s32 %s170, %s168
        %s172 = scalar_lea.vmem %s1, %s171
        %v173 = vld [vmem:[%s172] sm:$0x1]
        %v174 = vlaneseq
        %v175 = vand.u32 %v174, 127
        %v176 = vand.u32 %v175, 1
        %vm177 = vcmp.eq.s32.totalorder %v176, 1
        %s178 = sld [smem:[#allocation2]]
        %v179 = vstv %s178
        %v180 = vmul.f32 %v173, %v179
        %s181 = sld [smem:[#allocation2 + $0x3]]
        %s182 = sld [smem:[#allocation2 + $0x2]]
        %v183 = vstv %s181
        %v184 = vstv %s182
        %v185 = vsel %vm177, %v183, %v184
        %v186 = vadd.f32 %v180, %v185
        %vm187 = vcmask 122880
        %188 = vst.msk [vmem:[%s166] sm:$0x1] %vm187, %v186
        %s189 = sld [smem:[#allocation2 + $0x1]]
        %v190 = vstv %s189
        %v191 = vmul.f32 %v173, %v190
        %s192 = sld [smem:[#allocation2 + $0x5]]
        %s193 = sld [smem:[#allocation2 + $0x4]]
        %v194 = vstv %s192
        %v195 = vstv %s193
        %v196 = vsel %vm177, %v194, %v195
        %v197 = vadd.f32 %v191, %v196
        %s198 = scalar_lea.vmem %s166, 1 [#allocation5]
        %199 = vst.msk [vmem:[%s198] sm:$0x1] %vm187, %v197
        %s200 = sand.u32 %s88, 1
        %s201 = scalar_lea.sflag [#allocation3], %s200
        %s202 = sand.u32 %s88, 1
        %s203 = smul.addr %s202, 2
        %s204 = scalar_lea.vmem [#allocation5], %s203
        // Predicated region
        $region33: #{tpu_custom_call.1} parent=27 // pred_check
          %p205 = pneg %p98
        $region34: #{tpu_custom_call.1} parent=27 // pred_check_branch
          %207 = sbr.rel (%p205) target = $region36
        $region35: #{tpu_custom_call.1} parent=27 // pred_region
          %s209 = ssub.s32 32, 32
          %210 = vsyncadd %s201, %s209
          %s211 = smul.addr %s21, 2
          %s212 = sadd.s32 %s22, %s211
          %s213 = smul.addr %s212, 16
          %s214 = scalar_lea.hbm %s2, %s213
          %s215 = sshll.u32 %s204, 4
          %s216 = int_to_ptr.vmem [resolvable:$true] %s215
          %221 = dma.vmem_to_hbm [thread:$0]  %s216, 32, %s214, %s201, 16, 16, 1
        $region36: #{tpu_custom_call.1} parent=27 // pred_fallthru
          _
      $region28: #{tpu_custom_call.1} parent=5 // pred_fallthru
        _
      %p222 = scmp.le.s32.totalorder 2, %s12
      // Predicated region
      $region37: #{tpu_custom_call.1} parent=5 // pred_check
        %p223 = pneg %p222
      $region38: #{tpu_custom_call.1} parent=5 // pred_check_branch
        %225 = sbr.rel (%p223) target = $region40
      $region39: #{tpu_custom_call.1} parent=5 // pred_region
        %s226 = ssub.s32 %s12, 2
        // Predicated region
        $region41: #{tpu_custom_call.1} parent=39 // pred_check
          %p227 = pneg %p104
        $region42: #{tpu_custom_call.1} parent=39 // pred_check_branch
          %229 = sbr.rel (%p227) target = $region44
        $region43: #{tpu_custom_call.1} parent=39 // pred_region
          %s230 = sand.u32 %s89, 1
          %s231 = scalar_lea.sflag [#allocation3], %s230
          %s232 = sand.u32 %s89, 1
          %s233 = smul.addr %s232, 2
          %s234 = scalar_lea.vmem [#allocation5], %s233
          %235 = dma.done %s231, 32
        $region44: #{tpu_custom_call.1} parent=39 // pred_fallthru
          _
      $region40: #{tpu_custom_call.1} parent=5 // pred_fallthru
        _
    $region6: #{tpu_custom_call.1} parent=1 // loop_footer
      %s16 = sadd.s32 1, %s12
    $region7: #{tpu_custom_call.1} parent=1 // loop_footer_branch
      %11 = sbr.rel target = $region3
    $region8: #{tpu_custom_call.1} parent=1 // loop_exit
      _
    %236 = vsyncpa [#allocation3], 1
    %s237 = scalar_lea.sflag [#allocation3], 1
    %238 = vsyncpa %s237, 1
    %239 = vsyncpa [#allocation4], 1
    %s240 = scalar_lea.sflag [#allocation4], 1
    %241 = vsyncpa %s240, 1

</llo_original>
